<compile_context>
chip_gen: v6e
topology: v6e:2x2x1
jax: 0.10.0
libtpu: 0.0.40
codegen_flags: <defaults>
</compile_context>

<pallas_src>
import jax
import jax.numpy as jnp
from jax.experimental import pallas as pl
from jax.experimental.pallas import tpu as pltpu

# ----------------------------- model hyper-params -----------------------------
VOCAB = 10          # idim (number of characters, id 0 == padding_idx)
ODIM = 8            # output feature dim
EMBED_DIM = 32
ECONV_LAYERS = 2
ECONV_CHANS = 32
ECONV_FILTS = 5
EUNITS = 32         # BLSTM output dim (eunits // 2 per direction)
DUNITS = 32
DLAYERS = 2
PRENET_UNITS = 32
PRENET_LAYERS = 2
POSTNET_LAYERS = 2
POSTNET_CHANS = 32
POSTNET_FILTS = 5
ADIM = 32
ACONV_CHANS = 4
ACONV_FILTS = 2     # location conv kernel = 2*ACONV_FILTS + 1 = 5


# ----------------------------- in-kernel helpers -------------------------------
def _conv_bn_act(x_btc, w_col, gamma, beta, act):
    """Conv1d (same-padding) + BatchNorm1d (training batch stats) + activation.

    x_btc : (B, T, Cin) activations (channels-last)
    w_col : (K*Cin, Cout) im2col-ordered conv weights (tap-major, channel-minor)
    gamma, beta : (1, Cout)
    """
    B, T, Cin = x_btc.shape
    KC, Cout = w_col.shape
    K = KC // Cin
    pad = (K - 1) // 2
    zp = jnp.zeros((B, pad, Cin), jnp.float32)
    xp = jnp.concatenate([zp, x_btc, zp], axis=1)                       # (B, T+K-1, Cin)
    cols = jnp.concatenate([xp[:, k:k + T, :] for k in range(K)], axis=-1)
    acc = jnp.dot(cols.reshape(B * T, K * Cin), w_col,
                  preferred_element_type=jnp.float32)                   # (B*T, Cout)
    # BatchNorm1d (training-mode batch statistics, biased variance; includes
    # padded frames, matching espnet's unmasked behaviour)
    mean = jnp.mean(acc, axis=0, keepdims=True)
    var = jnp.mean((acc - mean) ** 2, axis=0, keepdims=True)
    y = gamma * (acc - mean) * jax.lax.rsqrt(var + 1e-5) + beta
    if act == "relu":
        y = jnp.maximum(y, 0.0)
    elif act == "tanh":
        y = jnp.tanh(y)
    return y.reshape(B, T, Cout)


# ----------------------------- Pallas kernels ---------------------------------
def _encoder_front_kernel(ids_ref, emb_ref, w1_ref, g1_ref, b1_ref,
                          w2_ref, g2_ref, b2_ref, o_ref):
    # Fused: embedding lookup (one-hot matmul) + 2x [conv1d + BN + ReLU].
    B, T, _ = o_ref.shape
    V, E = emb_ref.shape
    iota = jax.lax.broadcasted_iota(jnp.int32, (B * T, V), 1)
    onehot = (ids_ref[...] == iota).astype(jnp.float32)
    x = jnp.dot(onehot, emb_ref[...],
                preferred_element_type=jnp.float32).reshape(B, T, E)
    h = _conv_bn_act(x, w1_ref[...], g1_ref[...], b1_ref[...], "relu")
    h = _conv_bn_act(h, w2_ref[...], g2_ref[...], b2_ref[...], "relu")
    o_ref[...] = h


def _postnet_kernel(x_ref, w1_ref, g1_ref, b1_ref, w2_ref, g2_ref, b2_ref, o_ref):
    # Fused: 2x [conv1d + BN (+ tanh on first layer)] + residual add.
    x = x_ref[...]
    h = _conv_bn_act(x, w1_ref[...], g1_ref[...], b1_ref[...], "tanh")
    h = _conv_bn_act(h, w2_ref[...], g2_ref[...], b2_ref[...], "none")
    o_ref[...] = x + h


def _bilstm_kernel(xp_ref, whh_ref, o_ref, h_sc, c_sc):
    # xp_ref : (T, B, 8H) resident -- precomputed [fwd | bwd] input projections
    # whh_ref: (2H, 8H) block-diag recurrent weights for both directions
    # o_ref  : (T, B, 2H) resident output -- [h_fwd | h_bwd] per step
    t = pl.program_id(0)

    @pl.when(t == 0)
    def _():
        h_sc[...] = jnp.zeros_like(h_sc)
        c_sc[...] = jnp.zeros_like(c_sc)

    H = h_sc.shape[1] // 2
    gates = xp_ref[t] + jnp.dot(h_sc[...], whh_ref[...],
                                preferred_element_type=jnp.float32)     # (B, 8H)

    def cell(g, c):
        i = jax.nn.sigmoid(g[:, 0:H])
        f = jax.nn.sigmoid(g[:, H:2 * H])
        gg = jnp.tanh(g[:, 2 * H:3 * H])
        o = jax.nn.sigmoid(g[:, 3 * H:4 * H])
        cn = f * c + i * gg
        return o * jnp.tanh(cn), cn

    hf, cf = cell(gates[:, :4 * H], c_sc[:, :H])
    hb, cb = cell(gates[:, 4 * H:], c_sc[:, H:])
    hnew = jnp.concatenate([hf, hb], axis=1)
    h_sc[...] = hnew
    c_sc[...] = jnp.concatenate([cf, cb], axis=1)
    o_ref[t] = hnew


def _decoder_step_kernel(hs_ref, pre_ref, mask_ref, ainit_ref, ys_ref,
                         m2_ref, wdt_ref, wgm_ref, bg_ref,
                         pw1_ref, pb1_ref, pw2_ref, pb2_ref,
                         l0w_ref, l0b_ref, l1w_ref, l1b_ref, ow_ref, ob_ref,
                         out_ref, aw_ref,
                         z0, c0, z1, c1, awp):
    # One teacher-forced decoder step per grid iteration (grid over Lmax).
    # All inputs are VMEM-resident (constant index maps); outputs are resident
    # blocks written at dynamic row t and flushed to HBM once at the end.
    t = pl.program_id(0)
    B, T, E = hs_ref.shape
    D = z0.shape[1]

    @pl.when(t == 0)
    def _init():
        z0[...] = jnp.zeros_like(z0)
        c0[...] = jnp.zeros_like(c0)
        z1[...] = jnp.zeros_like(z1)
        c1[...] = jnp.zeros_like(c1)
        awp[...] = ainit_ref[...]        # uniform attention over valid positions

    def dot(a, b):
        return jnp.dot(a, b, preferred_element_type=jnp.float32)

    hs = hs_ref[...]
    mask = mask_ref[...]

    # ---- location-sensitive attention (loc-conv x mlp_att folded into m2) ----
    att_flat = dot(awp[...], m2_ref[...])                    # (B, T*A)
    dec_flat = dot(z0[...], wdt_ref[...])                    # (B, T*A)
    eh = jnp.tanh(att_flat + pre_ref[...] + dec_flat)        # (B, T*A)
    e = 2.0 * (dot(eh, wgm_ref[...]) + bg_ref[...])          # AttLoc scaling, (B, T)
    e = jnp.where(mask > 0.0, e, -1e30)
    e = e - jnp.max(e, axis=1, keepdims=True)
    ex = jnp.exp(e) * mask
    w = ex / jnp.sum(ex, axis=1, keepdims=True)              # (B, T)
    att_c = jnp.sum(w[:, :, None] * hs, axis=1)              # (B, E)

    # ---- prenet (dropout rate 0) ----
    prev = ys_ref[t]                                         # (B, odim)
    p1 = jnp.maximum(dot(prev, pw1_ref[...]) + pb1_ref[...], 0.0)
    p2 = jnp.maximum(dot(p1, pw2_ref[...]) + pb2_ref[...], 0.0)

    def lstm_cell(g, c):
        i = jax.nn.sigmoid(g[:, 0:D])
        f = jax.nn.sigmoid(g[:, D:2 * D])
        gg = jnp.tanh(g[:, 2 * D:3 * D])
        o = jax.nn.sigmoid(g[:, 3 * D:4 * D])
        cn = f * c + i * gg
        return o * jnp.tanh(cn), cn

    # decoder LSTM layer 0 (input = [att_c, prenet_out], weights concatenated)
    g0 = dot(jnp.concatenate([att_c, p2, z0[...]], axis=1), l0w_ref[...]) + l0b_ref[...]
    z0n, c0n = lstm_cell(g0, c0[...])
    # decoder LSTM layer 1
    g1 = dot(jnp.concatenate([z0n, z1[...]], axis=1), l1w_ref[...]) + l1b_ref[...]
    z1n, c1n = lstm_cell(g1, c1[...])
    z0[...] = z0n
    c0[...] = c0n
    z1[...] = z1n
    c1[...] = c1n

    # feat + stop-logit projections (use_concate=True), merged into one matmul
    out_ref[t] = dot(jnp.concatenate([z1n, att_c], axis=1), ow_ref[...]) + ob_ref[...]
    aw_ref[t] = w

    # cumulate attention weights (cumulate_att_w=True); step 0 replaces
    awp[...] = jnp.where(t == 0, w, awp[...] + w)


# ----------------------------- glue (plain JAX) --------------------------------
def _reverse_within_length(x_btc, ilens):
    B, T, _ = x_btc.shape
    t_idx = jnp.arange(T)[None, :]
    rev = jnp.clip(ilens[:, None] - 1 - t_idx, 0, T - 1)
    return jnp.take_along_axis(x_btc, rev[:, :, None], axis=1)


def _const_spec(shape):
    nd = len(shape)
    return pl.BlockSpec(shape, lambda t, _nd=nd: (0,) * _nd)


def run_bilstm(h_btc, ilens, p_fwd, p_bwd):
    """Fused bidirectional LSTM: both directions share one sequential grid."""
    wih_f, whh_f, b_f = p_fwd
    wih_b, whh_b, b_b = p_bwd
    B, T, C = h_btc.shape
    H = whh_f.shape[0]

    x_f = jnp.transpose(h_btc, (1, 0, 2))                                    # (T, B, C)
    x_b = jnp.transpose(_reverse_within_length(h_btc, ilens), (1, 0, 2))
    # precompute input projections for all T in one matmul per direction
    pf = jnp.einsum('tbc,ck->tbk', x_f, wih_f) + b_f[None]                   # (T, B, 4H)
    pb = jnp.einsum('tbc,ck->tbk', x_b, wih_b) + b_b[None]
    xproj = jnp.concatenate([pf, pb], axis=-1)                               # (T, B, 8H)

    whh_blk = jnp.zeros((2 * H, 8 * H), jnp.float32)
    whh_blk = whh_blk.at[:H, :4 * H].set(whh_f).at[H:, 4 * H:].set(whh_b)

    out = pl.pallas_call(
        _bilstm_kernel,
        grid=(T,),
        in_specs=[_const_spec((T, B, 8 * H)), _const_spec((2 * H, 8 * H))],
        out_specs=_const_spec((T, B, 2 * H)),
        out_shape=jax.ShapeDtypeStruct((T, B, 2 * H), jnp.float32),
        scratch_shapes=[pltpu.VMEM((B, 2 * H), jnp.float32),
                        pltpu.VMEM((B, 2 * H), jnp.float32)],
        compiler_params=pltpu.CompilerParams(dimension_semantics=("arbitrary",)),
    )(xproj, whh_blk)

    out_btc = jnp.transpose(out, (1, 0, 2))                                  # (B, T, 2H)
    out_f = out_btc[:, :, :H]
    out_b = _reverse_within_length(out_btc[:, :, H:], ilens)
    return jnp.concatenate([out_f, out_b], axis=-1)


def encoder_forward(params, xs_ids, ilens):
    B, T = xs_ids.shape
    (w1, g1, b1), (w2, g2, b2) = params["econvs"]
    K = w1.shape[0]
    h = pl.pallas_call(
        _encoder_front_kernel,
        out_shape=jax.ShapeDtypeStruct((B, T, ECONV_CHANS), jnp.float32),
    )(xs_ids.reshape(B * T, 1).astype(jnp.int32), params["embed"],
      w1.reshape(K * EMBED_DIM, ECONV_CHANS), g1.reshape(1, -1), b1.reshape(1, -1),
      w2.reshape(K * ECONV_CHANS, ECONV_CHANS), g2.reshape(1, -1), b2.reshape(1, -1))

    valid = (jnp.arange(T)[None, :] < ilens[:, None]).astype(jnp.float32)
    hs = run_bilstm(h, ilens, params["blstm_f"], params["blstm_b"]) * valid[:, :, None]
    return hs, ilens


def decoder_forward(params, hs, hlens, ys):
    B, Tmax, E = hs.shape
    _, Lmax, odim = ys.shape
    D = DUNITS
    A = ADIM
    p = params["dec"]
    Kc = p["w_loc"].shape[0]
    Fh = (Kc - 1) // 2

    mask = (jnp.arange(Tmax)[None, :] < hlens[:, None]).astype(jnp.float32)
    att_init = mask / hlens[:, None].astype(jnp.float32)
    # teacher forcing: prev_out at step 0 is zeros, then shifted targets
    ys_in = jnp.concatenate([jnp.zeros((B, 1, odim), jnp.float32), ys[:, :-1, :]], axis=1)
    ys_in = jnp.transpose(ys_in, (1, 0, 2))                                  # (Lmax, B, odim)

    # hoisted (loop-invariant) encoder projection, flattened to (B, Tmax*A)
    pre_enc = (jnp.einsum('bte,ea->bta', hs, p["w_enc"]) + p["b_enc"][None]
               ).reshape(B, Tmax * A)

    # location conv (no bias) folded with mlp_att (no bias) into one Toeplitz
    # matrix m2: att_feat[b, t, a] = sum_s awp[b, s] * wla[s - t + Fh, a]
    wla = jnp.dot(p["w_loc"], p["w_att"])                                    # (Kc, A)
    s_idx = jnp.arange(Tmax)[:, None]
    t_idx = jnp.arange(Tmax)[None, :]
    kk = s_idx - t_idx + Fh
    valid_k = (kk >= 0) & (kk < Kc)
    m2 = jnp.where(valid_k[:, :, None], wla[jnp.clip(kk, 0, Kc - 1)], 0.0)
    m2 = m2.reshape(Tmax, Tmax * A)

    wd_tiled = jnp.tile(p["w_dec"], (1, Tmax))                               # (D, Tmax*A)
    wg_mat = (jnp.eye(Tmax, dtype=jnp.float32)[:, None, :]
              * p["w_g"].reshape(1, A, 1)).reshape(Tmax * A, Tmax)           # (Tmax*A, Tmax)

    # concatenated decoder weights -> fewer / wider MXU matmuls per step
    l0_w = jnp.concatenate([p["l0_w_c"], p["l0_w_p"], p["l0_whh"]], axis=0)  # (E+P+D, 4D)
    l1_w = jnp.concatenate([p["l1_wih"], p["l1_whh"]], axis=0)               # (2D, 4D)
    out_w = jnp.concatenate(
        [jnp.concatenate([p["f_w_z"], p["q_w_z"]], axis=1),
         jnp.concatenate([p["f_w_c"], p["q_w_c"]], axis=1)], axis=0)         # (D+E, odim+1)
    out_b = jnp.concatenate([jnp.zeros((1, odim), jnp.float32), p["q_b"]], axis=1)

    inputs = [hs, pre_enc, mask, att_init, ys_in,
              m2, wd_tiled, wg_mat, p["b_g"],
              p["p_w1"], p["p_b1"], p["p_w2"], p["p_b2"],
              l0_w, p["l0_b"], l1_w, p["l1_b"], out_w, out_b]

    in_specs = [_const_spec(a.shape) for a in inputs]
    out_specs = [_const_spec((Lmax, B, odim + 1)),
                 _const_spec((Lmax, B, Tmax))]
    out_shape = [jax.ShapeDtypeStruct((Lmax, B, odim + 1), jnp.float32),
                 jax.ShapeDtypeStruct((Lmax, B, Tmax), jnp.float32)]

    out_fl, attw = pl.pallas_call(
        _decoder_step_kernel,
        grid=(Lmax,),
        in_specs=in_specs,
        out_specs=out_specs,
        out_shape=out_shape,
        scratch_shapes=[pltpu.VMEM((B, D), jnp.float32),
                        pltpu.VMEM((B, D), jnp.float32),
                        pltpu.VMEM((B, D), jnp.float32),
                        pltpu.VMEM((B, D), jnp.float32),
                        pltpu.VMEM((B, Tmax), jnp.float32)],
        compiler_params=pltpu.CompilerParams(dimension_semantics=("arbitrary",)),
    )(*inputs)

    out_blc = jnp.transpose(out_fl, (1, 0, 2))                               # (B, Lmax, odim+1)
    before_blc = out_blc[:, :, :odim]
    logits_bl = out_blc[:, :, odim]
    attw_blt = jnp.transpose(attw, (1, 0, 2))                                # (B, Lmax, Tmax)

    # fused postnet (2 layers) + residual add
    (pw1, pg1, pb1), (pw2, pg2, pb2) = params["postnet"]
    K = pw1.shape[0]
    after_blc = pl.pallas_call(
        _postnet_kernel,
        out_shape=jax.ShapeDtypeStruct((B, Lmax, odim), jnp.float32),
    )(before_blc,
      pw1.reshape(K * odim, POSTNET_CHANS), pg1.reshape(1, -1), pb1.reshape(1, -1),
      pw2.reshape(K * POSTNET_CHANS, odim), pg2.reshape(1, -1), pb2.reshape(1, -1))

    return after_blc, before_blc, logits_bl, attw_blt


def tacotron2_forward(params, xs, ilens, ys):
    hs, hlens = encoder_forward(params, xs, ilens)
    # spk_embed_dim is None -> no speaker embedding concat
    return decoder_forward(params, hs, hlens, ys)


# ----------------------------- parameter init ----------------------------------
def init_params(key):
    keys = iter(jax.random.split(key, 64))

    def nrm(shape, scale=0.1):
        return scale * jax.random.normal(next(keys), shape, dtype=jnp.float32)

    params = {}
    emb = nrm((VOCAB, EMBED_DIM))
    params["embed"] = emb.at[0].set(0.0)               # padding_idx=0 row is zero

    econvs = []
    cin = EMBED_DIM
    for _ in range(ECONV_LAYERS):
        econvs.append((nrm((ECONV_FILTS, cin, ECONV_CHANS)),
                       jnp.ones((ECONV_CHANS,), jnp.float32),
                       jnp.zeros((ECONV_CHANS,), jnp.float32)))
        cin = ECONV_CHANS
    params["econvs"] = econvs

    H = EUNITS // 2
    params["blstm_f"] = (nrm((ECONV_CHANS, 4 * H)), nrm((H, 4 * H)), nrm((1, 4 * H)))
    params["blstm_b"] = (nrm((ECONV_CHANS, 4 * H)), nrm((H, 4 * H)), nrm((1, 4 * H)))

    params["dec"] = dict(
        w_enc=nrm((EUNITS, ADIM)), b_enc=nrm((1, ADIM)),
        w_dec=nrm((DUNITS, ADIM)),
        w_loc=nrm((2 * ACONV_FILTS + 1, ACONV_CHANS)),
        w_att=nrm((ACONV_CHANS, ADIM)),
        w_g=nrm((1, ADIM)), b_g=nrm((1, 1)),
        p_w1=nrm((ODIM, PRENET_UNITS)), p_b1=nrm((1, PRENET_UNITS)),
        p_w2=nrm((PRENET_UNITS, PRENET_UNITS)), p_b2=nrm((1, PRENET_UNITS)),
        l0_w_c=nrm((EUNITS, 4 * DUNITS)), l0_w_p=nrm((PRENET_UNITS, 4 * DUNITS)),
        l0_whh=nrm((DUNITS, 4 * DUNITS)), l0_b=nrm((1, 4 * DUNITS)),
        l1_wih=nrm((DUNITS, 4 * DUNITS)), l1_whh=nrm((DUNITS, 4 * DUNITS)),
        l1_b=nrm((1, 4 * DUNITS)),
        f_w_z=nrm((DUNITS, ODIM)), f_w_c=nrm((EUNITS, ODIM)),
        q_w_z=nrm((DUNITS, 1)), q_w_c=nrm((EUNITS, 1)), q_b=nrm((1, 1)),
    )

    postnet = []
    cin = ODIM
    for i in range(POSTNET_LAYERS):
        cout = ODIM if i == POSTNET_LAYERS - 1 else POSTNET_CHANS
        postnet.append((nrm((POSTNET_FILTS, cin, cout)),
                        jnp.ones((cout,), jnp.float32),
                        jnp.zeros((cout,), jnp.float32)))
        cin = cout
    params["postnet"] = postnet
    return params


# ----------------------------- main ---------------------------------------------
if __name__ == "__main__":
    key = jax.random.PRNGKey(0)
    kx, ky, kp = jax.random.split(key, 3)

    B, Tmax, Lmax = 2, 8, 10
    ilens = jnp.array([8, 6], dtype=jnp.int32)
    xs = jax.random.randint(kx, (B, Tmax), 1, VOCAB, dtype=jnp.int32)
    pad_mask = jnp.arange(Tmax)[None, :] < ilens[:, None]
    xs = jnp.where(pad_mask, xs, 0)                     # padded char ids use id 0
    ys = jax.random.normal(ky, (B, Lmax, ODIM), dtype=jnp.float32)

    params = init_params(kp)
    after_outs, before_outs, logits, att_ws = tacotron2_forward(params, xs, ilens, ys)
    jax.block_until_ready((after_outs, before_outs, logits, att_ws))

    assert after_outs.shape == (B, Lmax, ODIM)
    assert before_outs.shape == (B, Lmax, ODIM)
    assert logits.shape == (B, Lmax)
    assert att_ws.shape == (B, Lmax, Tmax)
    print("KERNEL_OK")
</pallas_src>

<mosaic_0001>
module attributes {stable_mosaic.version = 11 : i64} {
  func.func @_encoder_front_kernel(%arg0: memref<16x1xi32, #tpu.memory_space<vmem>>, %arg1: memref<10x32xf32, #tpu.memory_space<vmem>>, %arg2: memref<160x32xf32, #tpu.memory_space<vmem>>, %arg3: memref<1x32xf32, #tpu.memory_space<vmem>>, %arg4: memref<1x32xf32, #tpu.memory_space<vmem>>, %arg5: memref<160x32xf32, #tpu.memory_space<vmem>>, %arg6: memref<1x32xf32, #tpu.memory_space<vmem>>, %arg7: memref<1x32xf32, #tpu.memory_space<vmem>>, %arg8: memref<2x8x32xf32, #tpu.memory_space<vmem>>) attributes {dimension_semantics = [], scalar_prefetch = 0 : i64, scratch_operands = 0 : i64, tpu.core_type = #tpu.core_type<tc>} {
    %0 = tpu.iota {dimensions = array<i32: 1>} : vector<16x10xi32>
    %c0 = arith.constant 0 : index
    %c0_0 = arith.constant 0 : index
    %1 = vector.load %arg0[%c0, %c0_0] : memref<16x1xi32, #tpu.memory_space<vmem>>, vector<16x1xi32>
    %2 = vector.broadcast %1 : vector<16x1xi32> to vector<16x10xi32>
    %3 = arith.cmpi eq, %2, %0 : vector<16x10xi32>
    %4 = arith.extui %3 : vector<16x10xi1> to vector<16x10xi32>
    %5 = arith.sitofp %4 : vector<16x10xi32> to vector<16x10xf32>
    %c0_1 = arith.constant 0 : index
    %c0_2 = arith.constant 0 : index
    %6 = vector.load %arg1[%c0_1, %c0_2] : memref<10x32xf32, #tpu.memory_space<vmem>>, vector<10x32xf32>
    %cst = arith.constant dense<0.000000e+00> : vector<16x32xf32>
    %7 = tpu.matmul %5, %6, %cst {dimension_numbers = #tpu.dot_dimension_numbers<[1], [0], [0], [1], [0, 0, 1, 1], [], []>} : vector<16x10xf32>, vector<10x32xf32>, vector<16x32xf32> -> vector<16x32xf32>
    %8 = vector.shape_cast %7 : vector<16x32xf32> to vector<2x8x32xf32>
    %c0_3 = arith.constant 0 : index
    %c0_4 = arith.constant 0 : index
    %9 = vector.load %arg2[%c0_3, %c0_4] : memref<160x32xf32, #tpu.memory_space<vmem>>, vector<160x32xf32>
    %c0_5 = arith.constant 0 : index
    %c0_6 = arith.constant 0 : index
    %10 = vector.load %arg3[%c0_5, %c0_6] : memref<1x32xf32, #tpu.memory_space<vmem>>, vector<1x32xf32>
    %c0_7 = arith.constant 0 : index
    %c0_8 = arith.constant 0 : index
    %11 = vector.load %arg4[%c0_7, %c0_8] : memref<1x32xf32, #tpu.memory_space<vmem>>, vector<1x32xf32>
    %cst_9 = arith.constant 0.000000e+00 : f32
    %12 = vector.broadcast %cst_9 : f32 to vector<2x2x32xf32>
    %13 = tpu.concatenate %12, %8, %12 in 1 : vector<2x2x32xf32>, vector<2x8x32xf32>, vector<2x2x32xf32> -> vector<2x12x32xf32>
    %14 = vector.extract_strided_slice %13 {offsets = [0, 0, 0], sizes = [2, 8, 32], strides = [1, 1, 1]} : vector<2x12x32xf32> to vector<2x8x32xf32>
    %15 = vector.extract_strided_slice %13 {offsets = [0, 1, 0], sizes = [2, 8, 32], strides = [1, 1, 1]} : vector<2x12x32xf32> to vector<2x8x32xf32>
    %16 = vector.extract_strided_slice %13 {offsets = [0, 2, 0], sizes = [2, 8, 32], strides = [1, 1, 1]} : vector<2x12x32xf32> to vector<2x8x32xf32>
    %17 = vector.extract_strided_slice %13 {offsets = [0, 3, 0], sizes = [2, 8, 32], strides = [1, 1, 1]} : vector<2x12x32xf32> to vector<2x8x32xf32>
    %18 = vector.extract_strided_slice %13 {offsets = [0, 4, 0], sizes = [2, 8, 32], strides = [1, 1, 1]} : vector<2x12x32xf32> to vector<2x8x32xf32>
    %19 = tpu.concatenate %14, %15, %16, %17, %18 in 2 : vector<2x8x32xf32>, vector<2x8x32xf32>, vector<2x8x32xf32>, vector<2x8x32xf32>, vector<2x8x32xf32> -> vector<2x8x160xf32>
    %20 = vector.shape_cast %19 : vector<2x8x160xf32> to vector<16x160xf32>
    %cst_10 = arith.constant dense<0.000000e+00> : vector<16x32xf32>
    %21 = tpu.matmul %20, %9, %cst_10 {dimension_numbers = #tpu.dot_dimension_numbers<[1], [0], [0], [1], [0, 0, 1, 1], [], []>} : vector<16x160xf32>, vector<160x32xf32>, vector<16x32xf32> -> vector<16x32xf32>
    %cst_11 = arith.constant dense<0.000000e+00> : vector<32xf32>
    %22 = vector.multi_reduction <add>, %21, %cst_11 [0] : vector<16x32xf32> to vector<32xf32>
    %23 = vector.shape_cast %22 : vector<32xf32> to vector<1x32xf32>
    %cst_12 = arith.constant 1.600000e+01 : f32
    %24 = vector.broadcast %cst_12 : f32 to vector<1x32xf32>
    %25 = arith.divf %23, %24 : vector<1x32xf32>
    %26 = vector.broadcast %25 : vector<1x32xf32> to vector<16x32xf32>
    %27 = arith.subf %21, %26 : vector<16x32xf32>
    %28 = arith.mulf %27, %27 : vector<16x32xf32>
    %cst_13 = arith.constant dense<0.000000e+00> : vector<32xf32>
    %29 = vector.multi_reduction <add>, %28, %cst_13 [0] : vector<16x32xf32> to vector<32xf32>
    %30 = vector.shape_cast %29 : vector<32xf32> to vector<1x32xf32>
    %cst_14 = arith.constant 1.600000e+01 : f32
    %31 = vector.broadcast %cst_14 : f32 to vector<1x32xf32>
    %32 = arith.divf %30, %31 : vector<1x32xf32>
    %33 = vector.broadcast %25 : vector<1x32xf32> to vector<16x32xf32>
    %34 = arith.subf %21, %33 : vector<16x32xf32>
    %35 = vector.broadcast %10 : vector<1x32xf32> to vector<16x32xf32>
    %36 = arith.mulf %35, %34 : vector<16x32xf32>
    %cst_15 = arith.constant 9.99999974E-6 : f32
    %37 = vector.broadcast %cst_15 : f32 to vector<1x32xf32>
    %38 = arith.addf %32, %37 : vector<1x32xf32>
    %39 = math.rsqrt %38 : vector<1x32xf32>
    %40 = vector.broadcast %39 : vector<1x32xf32> to vector<16x32xf32>
    %41 = arith.mulf %36, %40 : vector<16x32xf32>
    %42 = vector.broadcast %11 : vector<1x32xf32> to vector<16x32xf32>
    %43 = arith.addf %41, %42 : vector<16x32xf32>
    %cst_16 = arith.constant 0.000000e+00 : f32
    %44 = vector.broadcast %cst_16 : f32 to vector<16x32xf32>
    %45 = arith.maximumf %43, %44 : vector<16x32xf32>
    %46 = vector.shape_cast %45 : vector<16x32xf32> to vector<2x8x32xf32>
    %c0_17 = arith.constant 0 : index
    %c0_18 = arith.constant 0 : index
    %47 = vector.load %arg5[%c0_17, %c0_18] : memref<160x32xf32, #tpu.memory_space<vmem>>, vector<160x32xf32>
    %c0_19 = arith.constant 0 : index
    %c0_20 = arith.constant 0 : index
    %48 = vector.load %arg6[%c0_19, %c0_20] : memref<1x32xf32, #tpu.memory_space<vmem>>, vector<1x32xf32>
    %c0_21 = arith.constant 0 : index
    %c0_22 = arith.constant 0 : index
    %49 = vector.load %arg7[%c0_21, %c0_22] : memref<1x32xf32, #tpu.memory_space<vmem>>, vector<1x32xf32>
    %cst_23 = arith.constant 0.000000e+00 : f32
    %50 = vector.broadcast %cst_23 : f32 to vector<2x2x32xf32>
    %51 = tpu.concatenate %50, %46, %50 in 1 : vector<2x2x32xf32>, vector<2x8x32xf32>, vector<2x2x32xf32> -> vector<2x12x32xf32>
    %52 = vector.extract_strided_slice %51 {offsets = [0, 0, 0], sizes = [2, 8, 32], strides = [1, 1, 1]} : vector<2x12x32xf32> to vector<2x8x32xf32>
    %53 = vector.extract_strided_slice %51 {offsets = [0, 1, 0], sizes = [2, 8, 32], strides = [1, 1, 1]} : vector<2x12x32xf32> to vector<2x8x32xf32>
    %54 = vector.extract_strided_slice %51 {offsets = [0, 2, 0], sizes = [2, 8, 32], strides = [1, 1, 1]} : vector<2x12x32xf32> to vector<2x8x32xf32>
    %55 = vector.extract_strided_slice %51 {offsets = [0, 3, 0], sizes = [2, 8, 32], strides = [1, 1, 1]} : vector<2x12x32xf32> to vector<2x8x32xf32>
    %56 = vector.extract_strided_slice %51 {offsets = [0, 4, 0], sizes = [2, 8, 32], strides = [1, 1, 1]} : vector<2x12x32xf32> to vector<2x8x32xf32>
    %57 = tpu.concatenate %52, %53, %54, %55, %56 in 2 : vector<2x8x32xf32>, vector<2x8x32xf32>, vector<2x8x32xf32>, vector<2x8x32xf32>, vector<2x8x32xf32> -> vector<2x8x160xf32>
    %58 = vector.shape_cast %57 : vector<2x8x160xf32> to vector<16x160xf32>
    %cst_24 = arith.constant dense<0.000000e+00> : vector<16x32xf32>
    %59 = tpu.matmul %58, %47, %cst_24 {dimension_numbers = #tpu.dot_dimension_numbers<[1], [0], [0], [1], [0, 0, 1, 1], [], []>} : vector<16x160xf32>, vector<160x32xf32>, vector<16x32xf32> -> vector<16x32xf32>
    %cst_25 = arith.constant dense<0.000000e+00> : vector<32xf32>
    %60 = vector.multi_reduction <add>, %59, %cst_25 [0] : vector<16x32xf32> to vector<32xf32>
    %61 = vector.shape_cast %60 : vector<32xf32> to vector<1x32xf32>
    %cst_26 = arith.constant 1.600000e+01 : f32
    %62 = vector.broadcast %cst_26 : f32 to vector<1x32xf32>
    %63 = arith.divf %61, %62 : vector<1x32xf32>
    %64 = vector.broadcast %63 : vector<1x32xf32> to vector<16x32xf32>
    %65 = arith.subf %59, %64 : vector<16x32xf32>
    %66 = arith.mulf %65, %65 : vector<16x32xf32>
    %cst_27 = arith.constant dense<0.000000e+00> : vector<32xf32>
    %67 = vector.multi_reduction <add>, %66, %cst_27 [0] : vector<16x32xf32> to vector<32xf32>
    %68 = vector.shape_cast %67 : vector<32xf32> to vector<1x32xf32>
    %cst_28 = arith.constant 1.600000e+01 : f32
    %69 = vector.broadcast %cst_28 : f32 to vector<1x32xf32>
    %70 = arith.divf %68, %69 : vector<1x32xf32>
    %71 = vector.broadcast %63 : vector<1x32xf32> to vector<16x32xf32>
    %72 = arith.subf %59, %71 : vector<16x32xf32>
    %73 = vector.broadcast %48 : vector<1x32xf32> to vector<16x32xf32>
    %74 = arith.mulf %73, %72 : vector<16x32xf32>
    %cst_29 = arith.constant 9.99999974E-6 : f32
    %75 = vector.broadcast %cst_29 : f32 to vector<1x32xf32>
    %76 = arith.addf %70, %75 : vector<1x32xf32>
    %77 = math.rsqrt %76 : vector<1x32xf32>
    %78 = vector.broadcast %77 : vector<1x32xf32> to vector<16x32xf32>
    %79 = arith.mulf %74, %78 : vector<16x32xf32>
    %80 = vector.broadcast %49 : vector<1x32xf32> to vector<16x32xf32>
    %81 = arith.addf %79, %80 : vector<16x32xf32>
    %cst_30 = arith.constant 0.000000e+00 : f32
    %82 = vector.broadcast %cst_30 : f32 to vector<16x32xf32>
    %83 = arith.maximumf %81, %82 : vector<16x32xf32>
    %84 = vector.shape_cast %83 : vector<16x32xf32> to vector<2x8x32xf32>
    %c0_31 = arith.constant 0 : index
    %c0_32 = arith.constant 0 : index
    %c0_33 = arith.constant 0 : index
    %85 = vector.load %arg8[%c0_31, %c0_32, %c0_33] : memref<2x8x32xf32, #tpu.memory_space<vmem>>, vector<2x8x32xf32>
    tpu.vector_store %arg8[%c0_31, %c0_32, %c0_33], %84 {strides = array<i32>} : memref<2x8x32xf32, #tpu.memory_space<vmem>>, vector<2x8x32xf32>,
    return
  }
}

</mosaic_0001>

<llo_original>
// kernel: tpu_custom_call.1
$region0: #{tpu_custom_call.1}
  #allocation0 [shape = 'u32[]', space=smem, size = 0x4, offset = 0x4, fixed_abs, tag = 'smem constant byte address 0x4 - core index']
  #allocation1 [shape = 'u32[144,128]{1,0:T(1,128)}', space=vmem, size = 0x12000, scoped, tag = 'internal scratch']
  %s0 = inlined_call_operand.vmem [shape: s32[16,1], index: 0, kind: input, shape index: {}]
  %s1 = inlined_call_operand.vmem [shape: f32[10,32], index: 1, kind: input, shape index: {}]
  %s2 = inlined_call_operand.vmem [shape: f32[160,32], index: 2, kind: input, shape index: {}]
  %s3 = inlined_call_operand.vmem [shape: f32[1,32], index: 3, kind: input, shape index: {}]
  %s4 = inlined_call_operand.vmem [shape: f32[1,32], index: 4, kind: input, shape index: {}]
  %s5 = inlined_call_operand.vmem [shape: f32[160,32], index: 5, kind: input, shape index: {}]
  %s6 = inlined_call_operand.vmem [shape: f32[1,32], index: 6, kind: input, shape index: {}]
  %s7 = inlined_call_operand.vmem [shape: f32[1,32], index: 7, kind: input, shape index: {}]
  %s8 = inlined_call_operand.hbm [shape: f32[2,8,32], index: 8, kind: output, shape index: {}]
  %s9 = sld [smem:[#allocation0]]
  $region42: #{tpu_custom_call.1} parent=0
    _
  %s11 = ssub.s32 1, %s9
  %s12 = scalar_select 0, %s11, %s9
  $region1: #{tpu_custom_call.1} parent=0
    #allocation2 [shape = 'u8[8192]{0}', space=vmem, size = 0x2000, scoped, tag = 'output window, operand 0, single buffered']
    #allocation3 [shape = 's32[1]{0}', space=sflag, size = 0x4, scoped, tag = 'scoped memory for tpu_custom_call.1']
    %13 = vsyncpa [#allocation3], 0
    // Predicated region
    $region2: #{tpu_custom_call.1} parent=1 // pred_check
      _
    $region3: #{tpu_custom_call.1} parent=1 // pred_check_branch
      %15 = sbr.rel (0) target = $region5
    $region4: #{tpu_custom_call.1} parent=1 // pred_region
      _
    $region5: #{tpu_custom_call.1} parent=1 // pred_fallthru
      _
    // Predicated region
    $region6: #{tpu_custom_call.1} parent=1 // pred_check
      _
    $region7: #{tpu_custom_call.1} parent=1 // pred_check_branch
      %17 = sbr.rel (0) target = $region9
    $region8: #{tpu_custom_call.1} parent=1 // pred_region
      _
    $region9: #{tpu_custom_call.1} parent=1 // pred_fallthru
      _
    // Predicated region
    $region10: #{tpu_custom_call.1} parent=1 // pred_check
      _
    $region11: #{tpu_custom_call.1} parent=1 // pred_check_branch
      %19 = sbr.rel (0) target = $region13
    $region12: #{tpu_custom_call.1} parent=1 // pred_region
      _
    $region13: #{tpu_custom_call.1} parent=1 // pred_fallthru
      _
    // Predicated region
    $region14: #{tpu_custom_call.1} parent=1 // pred_check
      _
    $region15: #{tpu_custom_call.1} parent=1 // pred_check_branch
      %21 = sbr.rel (0) target = $region17
    $region16: #{tpu_custom_call.1} parent=1 // pred_region
      _
    $region17: #{tpu_custom_call.1} parent=1 // pred_fallthru
      _
    // Predicated region
    $region18: #{tpu_custom_call.1} parent=1 // pred_check
      _
    $region19: #{tpu_custom_call.1} parent=1 // pred_check_branch
      %23 = sbr.rel (0) target = $region21
    $region20: #{tpu_custom_call.1} parent=1 // pred_region
      _
    $region21: #{tpu_custom_call.1} parent=1 // pred_fallthru
      _
    // Predicated region
    $region22: #{tpu_custom_call.1} parent=1 // pred_check
      _
    $region23: #{tpu_custom_call.1} parent=1 // pred_check_branch
      %25 = sbr.rel (0) target = $region25
    $region24: #{tpu_custom_call.1} parent=1 // pred_region
      _
    $region25: #{tpu_custom_call.1} parent=1 // pred_fallthru
      _
    // Predicated region
    $region26: #{tpu_custom_call.1} parent=1 // pred_check
      _
    $region27: #{tpu_custom_call.1} parent=1 // pred_check_branch
      %27 = sbr.rel (0) target = $region29
    $region28: #{tpu_custom_call.1} parent=1 // pred_region
      _
    $region29: #{tpu_custom_call.1} parent=1 // pred_fallthru
      _
    // Predicated region
    $region30: #{tpu_custom_call.1} parent=1 // pred_check
      _
    $region31: #{tpu_custom_call.1} parent=1 // pred_check_branch
      %29 = sbr.rel (0) target = $region33
    $region32: #{tpu_custom_call.1} parent=1 // pred_region
      _
    $region33: #{tpu_custom_call.1} parent=1 // pred_fallthru
      _
    %v30 = vlaneseq
    %v31 = vand.u32 %v30, 127
    %v32 = vld [vmem:[%s0] sm:$0xff]
    %v33 = vld [vmem:[%s0 + $0x8] sm:$0xff]
    %34 = vset.pattern.permute.xlu0 0
    %35 = vperm.xlu0 %34, %v32
    %v36 = vpop.permute.xlu0 %35
    %37 = vset.pattern.permute.xlu0 0
    %38 = vperm.xlu0 %37, %v33
    %v39 = vpop.permute.xlu0 %38
    %vm40 = vcmp.eq.s32.totalorder %v36, %v31
    %vm41 = vcmp.eq.s32.totalorder %v39, %v31
    %v42 = vsel %vm40, 1, 0
    %v43 = vsel %vm41, 1, 0
    %v44 = vcvt.s32.f32 %v42
    %v45 = vcvt.s32.f32 %v43
    %v46 = vld [vmem:[%s1] sm:$0xff]
    %v47 = vld [vmem:[%s1 + $0x8] sm:$0x3]
    %vm48 = vcmask 80896
    %v50 = vsel %vm48, %v44, 0
    %v53 = vsel %vm48, %v45, 0
    %vm55 = vcmask 1041408
    %v57 = vsel %vm55, %v47, 0
    %59 = vmatprep.subr.mxu0 0.0
    %60 = vmatpush1.msra.mxu0 0.0
    %61 = vmatprep.subr.mxu0 0.0
    %62 = vmatpush1.msra.mxu0 0.0
    %63 = vmatprep.subr.mxu0 0.0
    %64 = vmatpush1.msra.mxu0 0.0
    %65 = vmatprep.subr.mxu0 0.0
    %66 = vmatpush1.msra.mxu0 0.0
    %67 = vmatprep.subr.mxu0 0.0
    %68 = vmatpush1.msra.mxu0 0.0
    %69 = vmatprep.subr.mxu0 0.0
    %70 = vmatpush1.msra.mxu0 0.0
    %71 = vmatprep.subr.mxu0 0.0
    %72 = vmatpush1.msra.mxu0 0.0
    %73 = vmatprep.subr.mxu0 0.0
    %74 = vmatpush1.msra.mxu0 0.0
    %75 = vmatprep.subr.mxu0 0.0
    %76 = vmatpush1.msra.mxu0 0.0
    %77 = vmatprep.subr.mxu0 0.0
    %78 = vmatpush1.msra.mxu0 0.0
    %79 = vmatprep.subr.mxu0 0.0
    %80 = vmatpush1.msra.mxu0 0.0
    %81 = vmatprep.subr.mxu0 0.0
    %82 = vmatpush1.msra.mxu0 0.0
    %83 = vmatprep.subr.mxu0 0.0
    %84 = vmatpush1.msra.mxu0 0.0
    %85 = vmatprep.subr.mxu0 0.0
    %86 = vmatpush1.msra.mxu0 0.0
    %87 = vmatprep.subr.mxu0 0.0
    %88 = vmatpush1.msra.mxu0 %v57
    %89 = vmatprep.subr.mxu0 0.0
    %90 = vmatpush1.msra.mxu0 %v46
    %91 = vmatprep.subr.mxu0 0.0
    %92 = vmatpush2.msra.mxu0 0.0
    %93 = vmatprep.subr.mxu0 0.0
    %94 = vmatpush2.msra.mxu0 0.0
    %95 = vmatprep.subr.mxu0 0.0
    %96 = vmatpush2.msra.mxu0 0.0
    %97 = vmatprep.subr.mxu0 0.0
    %98 = vmatpush2.msra.mxu0 0.0
    %99 = vmatprep.subr.mxu0 0.0
    %100 = vmatpush2.msra.mxu0 0.0
    %101 = vmatprep.subr.mxu0 0.0
    %102 = vmatpush2.msra.mxu0 0.0
    %103 = vmatprep.subr.mxu0 0.0
    %104 = vmatpush2.msra.mxu0 0.0
    %105 = vmatprep.subr.mxu0 0.0
    %106 = vmatpush2.msra.mxu0 0.0
    %107 = vmatprep.subr.mxu0 0.0
    %108 = vmatpush2.msra.mxu0 0.0
    %109 = vmatprep.subr.mxu0 0.0
    %110 = vmatpush2.msra.mxu0 0.0
    %111 = vmatprep.subr.mxu0 0.0
    %112 = vmatpush2.msra.mxu0 0.0
    %113 = vmatprep.subr.mxu0 0.0
    %114 = vmatpush2.msra.mxu0 0.0
    %115 = vmatprep.subr.mxu0 0.0
    %116 = vmatpush2.msra.mxu0 0.0
    %117 = vmatprep.subr.mxu0 0.0
    %118 = vmatpush2.msra.mxu0 0.0
    %119 = vmatprep.subr.mxu0 0.0
    %120 = vmatpush2.msra.mxu0 0.0
    %121 = vmatprep.subr.mxu0 0.0
    %122 = vmatpush2.msra.mxu0 0.0
    %123 = vmatprep.mubr.f32.mxu0 0.0
    %124 = vmatmul.mubr.f32.gmra.mxu0 %v50
    %v125 = vpop.f32.mrf.mxu0
    %v126 = vadd.f32 0.0, %v125
    %v127 = vpop.f32.mrf.mxu0
    %128 = vmatprep.mubr.f32.mxu0 0.0
    %129 = vmatmul.mubr.f32.gmra.mxu0 %v53
    %v130 = vpop.f32.mrf.mxu0
    %v131 = vadd.f32 0.0, %v130
    %v132 = vpop.f32.mrf.mxu0
    %133 = vdwg.mxu0
    %v134 = vld [vmem:[%s2] sm:$0xff]
    %v135 = vld [vmem:[%s2 + $0x8] sm:$0xff]
    %v136 = vld [vmem:[%s2 + $0x10] sm:$0xff]
    %v137 = vld [vmem:[%s2 + $0x18] sm:$0xff]
    %v138 = vld [vmem:[%s2 + $0x20] sm:$0xff]
    %v139 = vld [vmem:[%s2 + $0x28] sm:$0xff]
    %v140 = vld [vmem:[%s2 + $0x30] sm:$0xff]
    %v141 = vld [vmem:[%s2 + $0x38] sm:$0xff]
    %v142 = vld [vmem:[%s2 + $0x40] sm:$0xff]
    %v143 = vld [vmem:[%s2 + $0x48] sm:$0xff]
    %v144 = vld [vmem:[%s2 + $0x50] sm:$0xff]
    %v145 = vld [vmem:[%s2 + $0x58] sm:$0xff]
    %v146 = vld [vmem:[%s2 + $0x60] sm:$0xff]
    %v147 = vld [vmem:[%s2 + $0x68] sm:$0xff]
    %v148 = vld [vmem:[%s2 + $0x70] sm:$0xff]
    %v149 = vld [vmem:[%s2 + $0x78] sm:$0xff]
    %v150 = vld [vmem:[%s2 + $0x80] sm:$0xff]
    %v151 = vld [vmem:[%s2 + $0x88] sm:$0xff]
    %v152 = vld [vmem:[%s2 + $0x90] sm:$0xff]
    %v153 = vld [vmem:[%s2 + $0x98] sm:$0xff]
    %v154 = vld [vmem:[%s3] sm:$0x1]
    %v155 = vld [vmem:[%s4] sm:$0x1]
    %v158 = vrot.slane %v126, 6
    %v159 = vrot.slane %v131, 6
    %v162 = vsel %vm55, 0.0, %v158
    %v163 = vsel %vm55, 0.0, %v159
    %v164 = vsel %vm55, %v158, 0.0
    %v165 = vsel %vm55, %v159, 0.0
    %vm170 = vcmask 1046528
    %v171 = vrot.slane %v162, 1
    %v172 = vrot.slane %v164, 1
    %v173 = vsel %vm170, %v171, %v172
    %v174 = vrot.slane %v163, 1
    %v175 = vrot.slane %v165, 1
    %v176 = vsel %vm170, %v174, %v175
    %177 = vrot.lane.b32.xlu0 %v173, 32
    %v178 = vpop.permute.xlu0 %177
    %179 = vrot.lane.b32.xlu0 %v176, 32
    %v180 = vpop.permute.xlu0 %179
    %vm183 = vcmask 1045504
    %v184 = vrot.slane %v162, 2
    %v185 = vrot.slane %v164, 2
    %v186 = vsel %vm183, %v184, %v185
    %v187 = vrot.slane %v163, 2
    %v188 = vrot.slane %v165, 2
    %v189 = vsel %vm183, %v187, %v188
    %190 = vrot.lane.b32.xlu0 %v186, 64
    %v191 = vpop.permute.xlu0 %190
    %192 = vrot.lane.b32.xlu0 %v189, 64
    %v193 = vpop.permute.xlu0 %192
    %vm196 = vcmask 1044480
    %v197 = vrot.slane %v162, 3
    %v198 = vrot.slane %v164, 3
    %v199 = vsel %vm196, %v197, %v198
    %v200 = vrot.slane %v163, 3
    %v201 = vrot.slane %v165, 3
    %v202 = vsel %vm196, %v200, %v201
    %203 = vrot.lane.b32.xlu0 %v199, 96
    %v204 = vpop.permute.xlu0 %203
    %205 = vrot.lane.b32.xlu0 %v202, 96
    %v206 = vpop.permute.xlu0 %205
    %vm209 = vcmask 1043456
    %v210 = vrot.slane %v162, 4
    %v211 = vrot.slane %v164, 4
    %v212 = vsel %vm209, %v210, %v211
    %v213 = vrot.slane %v163, 4
    %v214 = vrot.slane %v165, 4
    %v215 = vsel %vm209, %v213, %v214
    %vm216 = vcmask 261120
    %v217 = vsel %vm216, %v162, %v178
    %v218 = vsel %vm216, %v163, %v180
    %vm219 = vcmask 523264
    %v220 = vsel %vm219, %v217, %v191
    %v221 = vsel %vm219, %v218, %v193
    %vm222 = vcmask 785408
    %v223 = vsel %vm222, %v220, %v204
    %v224 = vsel %vm222, %v221, %v206
    %v225 = vsel %vm216, %v212, 0
    %v227 = vsel %vm216, %v215, 0
    %229 = vmatprep.subr.mxu0 0.0
    %230 = vmatpush1.msra.mxu0 %v149
    %231 = vmatprep.subr.mxu0 0.0
    %232 = vmatpush1.msra.mxu0 %v148
    %233 = vmatprep.subr.mxu0 0.0
    %234 = vmatpush1.msra.mxu0 %v147
    %235 = vmatprep.subr.mxu0 0.0
    %236 = vmatpush1.msra.mxu0 %v146
    %237 = vmatprep.subr.mxu0 0.0
    %238 = vmatpush1.msra.mxu0 %v145
    %239 = vmatprep.subr.mxu0 0.0
    %240 = vmatpush1.msra.mxu0 %v144
    %241 = vmatprep.subr.mxu0 0.0
    %242 = vmatpush1.msra.mxu0 %v143
    %243 = vmatprep.subr.mxu0 0.0
    %244 = vmatpush1.msra.mxu0 %v142
    %245 = vmatprep.subr.mxu0 0.0
    %246 = vmatpush1.msra.mxu0 %v141
    %247 = vmatprep.subr.mxu0 0.0
    %248 = vmatpush1.msra.mxu0 %v140
    %249 = vmatprep.subr.mxu0 0.0
    %250 = vmatpush1.msra.mxu0 %v139
    %251 = vmatprep.subr.mxu0 0.0
    %252 = vmatpush1.msra.mxu0 %v138
    %253 = vmatprep.subr.mxu0 0.0
    %254 = vmatpush1.msra.mxu0 %v137
    %255 = vmatprep.subr.mxu0 0.0
    %256 = vmatpush1.msra.mxu0 %v136
    %257 = vmatprep.subr.mxu0 0.0
    %258 = vmatpush1.msra.mxu0 %v135
    %259 = vmatprep.subr.mxu0 0.0
    %260 = vmatpush1.msra.mxu0 %v134
    %261 = vmatprep.subr.mxu0 0.0
    %262 = vmatpush2.msra.mxu0 0.0
    %263 = vmatprep.subr.mxu0 0.0
    %264 = vmatpush2.msra.mxu0 0.0
    %265 = vmatprep.subr.mxu0 0.0
    %266 = vmatpush2.msra.mxu0 0.0
    %267 = vmatprep.subr.mxu0 0.0
    %268 = vmatpush2.msra.mxu0 0.0
    %269 = vmatprep.subr.mxu0 0.0
    %270 = vmatpush2.msra.mxu0 0.0
    %271 = vmatprep.subr.mxu0 0.0
    %272 = vmatpush2.msra.mxu0 0.0
    %273 = vmatprep.subr.mxu0 0.0
    %274 = vmatpush2.msra.mxu0 0.0
    %275 = vmatprep.subr.mxu0 0.0
    %276 = vmatpush2.msra.mxu0 0.0
    %277 = vmatprep.subr.mxu0 0.0
    %278 = vmatpush2.msra.mxu0 0.0
    %279 = vmatprep.subr.mxu0 0.0
    %280 = vmatpush2.msra.mxu0 0.0
    %281 = vmatprep.subr.mxu0 0.0
    %282 = vmatpush2.msra.mxu0 0.0
    %283 = vmatprep.subr.mxu0 0.0
    %284 = vmatpush2.msra.mxu0 0.0
    %285 = vmatprep.subr.mxu0 0.0
    %286 = vmatpush2.msra.mxu0 %v153
    %287 = vmatprep.subr.mxu0 0.0
    %288 = vmatpush2.msra.mxu0 %v152
    %289 = vmatprep.subr.mxu0 0.0
    %290 = vmatpush2.msra.mxu0 %v151
    %291 = vmatprep.subr.mxu0 0.0
    %292 = vmatpush2.msra.mxu0 %v150
    %293 = vmatprep.mubr.f32.mxu0 %v225
    %294 = vmatmul.mubr.f32.gmra.mxu0 %v223
    %v295 = vpop.f32.mrf.mxu0
    %v296 = vadd.f32 0.0, %v295
    %v297 = vpop.f32.mrf.mxu0
    %298 = vmatprep.mubr.f32.mxu0 %v227
    %299 = vmatmul.mubr.f32.gmra.mxu0 %v224
    %v300 = vpop.f32.mrf.mxu0
    %v301 = vadd.f32 0.0, %v300
    %v302 = vpop.f32.mrf.mxu0
    %303 = vdwg.mxu0
    %v304 = vsel %vm216, %v296, 0.0
    %v305 = vsel %vm216, %v301, 0.0
    %v306 = vadd.f32 %v304, %v305
    %v307 = vrot.slane %v306, 4
    %v308 = vadd.f32 %v306, %v307
    %v309 = vrot.slane %v308, 2
    %v310 = vadd.f32 %v308, %v309
    %v311 = vrot.slane %v310, 1
    %v312 = vadd.f32 %v310, %v311
    %v313 = vrcp.pop 16.0
    %v314 = vmul.f32 %v312, %v313
    %v315 = vsub.f32 %v296, %v314
    %v316 = vsub.f32 %v301, %v314
    %v317 = vmul.f32 %v315, %v315
    %v318 = vmul.f32 %v316, %v316
    %v319 = vsel %vm216, %v317, 0.0
    %v320 = vsel %vm216, %v318, 0.0
    %v321 = vadd.f32 %v319, %v320
    %v322 = vrot.slane %v321, 4
    %v323 = vadd.f32 %v321, %v322
    %v324 = vrot.slane %v323, 2
    %v325 = vadd.f32 %v323, %v324
    %v326 = vrot.slane %v325, 1
    %v327 = vadd.f32 %v325, %v326
    %v328 = vmul.f32 %v327, %v313
    %v330 = vlaneseq
    %v331 = vshrl.u32 %v330, 7
    %v332 = vsub.s32 0, %v331
    %v333 = vrot.slane %v154, %v332
    %v335 = vmul.f32 %v333, %v315
    %v336 = vmul.f32 %v333, %v316
    %v337 = vadd.f32 %v328, 1e-05
    %v338 = vrsqrt.pop %v337
    %v339 = vmul.f32 %v335, %v338
    %v340 = vmul.f32 %v336, %v338
    %v342 = vlaneseq
    %v343 = vshrl.u32 %v342, 7
    %v344 = vsub.s32 0, %v343
    %v345 = vrot.slane %v155, %v344
    %v347 = vadd.f32 %v339, %v345
    %v348 = vadd.f32 %v340, %v345
    %v349 = vmax.f32 %v347, 0.0
    %v350 = vmax.f32 %v348, 0.0
    %v351 = vld [vmem:[%s5] sm:$0xff]
    %v352 = vld [vmem:[%s5 + $0x8] sm:$0xff]
    %v353 = vld [vmem:[%s5 + $0x10] sm:$0xff]
    %v354 = vld [vmem:[%s5 + $0x18] sm:$0xff]
    %v355 = vld [vmem:[%s5 + $0x20] sm:$0xff]
    %v356 = vld [vmem:[%s5 + $0x28] sm:$0xff]
    %v357 = vld [vmem:[%s5 + $0x30] sm:$0xff]
    %v358 = vld [vmem:[%s5 + $0x38] sm:$0xff]
    %v359 = vld [vmem:[%s5 + $0x40] sm:$0xff]
    %v360 = vld [vmem:[%s5 + $0x48] sm:$0xff]
    %v361 = vld [vmem:[%s5 + $0x50] sm:$0xff]
    %v362 = vld [vmem:[%s5 + $0x58] sm:$0xff]
    %v363 = vld [vmem:[%s5 + $0x60] sm:$0xff]
    %v364 = vld [vmem:[%s5 + $0x68] sm:$0xff]
    %v365 = vld [vmem:[%s5 + $0x70] sm:$0xff]
    %v366 = vld [vmem:[%s5 + $0x78] sm:$0xff]
    %v367 = vld [vmem:[%s5 + $0x80] sm:$0xff]
    %v368 = vld [vmem:[%s5 + $0x88] sm:$0xff]
    %v369 = vld [vmem:[%s5 + $0x90] sm:$0xff]
    %v370 = vld [vmem:[%s5 + $0x98] sm:$0xff]
    %v371 = vld [vmem:[%s6] sm:$0x1]
    %v372 = vld [vmem:[%s7] sm:$0x1]
    %v375 = vrot.slane %v349, 6
    %v376 = vrot.slane %v350, 6
    %v379 = vsel %vm55, 0.0, %v375
    %v380 = vsel %vm55, 0.0, %v376
    %v381 = vsel %vm55, %v375, 0.0
    %v382 = vsel %vm55, %v376, 0.0
    %v387 = vrot.slane %v379, 1
    %v388 = vrot.slane %v381, 1
    %v389 = vsel %vm170, %v387, %v388
    %v390 = vrot.slane %v380, 1
    %v391 = vrot.slane %v382, 1
    %v392 = vsel %vm170, %v390, %v391
    %393 = vrot.lane.b32.xlu0 %v389, 32
    %v394 = vpop.permute.xlu0 %393
    %395 = vrot.lane.b32.xlu0 %v392, 32
    %v396 = vpop.permute.xlu0 %395
    %v399 = vrot.slane %v379, 2
    %v400 = vrot.slane %v381, 2
    %v401 = vsel %vm183, %v399, %v400
    %v402 = vrot.slane %v380, 2
    %v403 = vrot.slane %v382, 2
    %v404 = vsel %vm183, %v402, %v403
    %405 = vrot.lane.b32.xlu0 %v401, 64
    %v406 = vpop.permute.xlu0 %405
    %407 = vrot.lane.b32.xlu0 %v404, 64
    %v408 = vpop.permute.xlu0 %407
    %v411 = vrot.slane %v379, 3
    %v412 = vrot.slane %v381, 3
    %v413 = vsel %vm196, %v411, %v412
    %v414 = vrot.slane %v380, 3
    %v415 = vrot.slane %v382, 3
    %v416 = vsel %vm196, %v414, %v415
    %417 = vrot.lane.b32.xlu0 %v413, 96
    %v418 = vpop.permute.xlu0 %417
    %419 = vrot.lane.b32.xlu0 %v416, 96
    %v420 = vpop.permute.xlu0 %419
    %v423 = vrot.slane %v379, 4
    %v424 = vrot.slane %v381, 4
    %v425 = vsel %vm209, %v423, %v424
    %v426 = vrot.slane %v380, 4
    %v427 = vrot.slane %v382, 4
    %v428 = vsel %vm209, %v426, %v427
    %v429 = vsel %vm216, %v379, %v394
    %v430 = vsel %vm216, %v380, %v396
    %v431 = vsel %vm219, %v429, %v406
    %v432 = vsel %vm219, %v430, %v408
    %v433 = vsel %vm222, %v431, %v418
    %v434 = vsel %vm222, %v432, %v420
    %v435 = vsel %vm216, %v425, 0
    %v437 = vsel %vm216, %v428, 0
    %439 = vmatprep.subr.mxu0 0.0
    %440 = vmatpush1.msra.mxu0 %v366
    %441 = vmatprep.subr.mxu0 0.0
    %442 = vmatpush1.msra.mxu0 %v365
    %443 = vmatprep.subr.mxu0 0.0
    %444 = vmatpush1.msra.mxu0 %v364
    %445 = vmatprep.subr.mxu0 0.0
    %446 = vmatpush1.msra.mxu0 %v363
    %447 = vmatprep.subr.mxu0 0.0
    %448 = vmatpush1.msra.mxu0 %v362
    %449 = vmatprep.subr.mxu0 0.0
    %450 = vmatpush1.msra.mxu0 %v361
    %451 = vmatprep.subr.mxu0 0.0
    %452 = vmatpush1.msra.mxu0 %v360
    %453 = vmatprep.subr.mxu0 0.0
    %454 = vmatpush1.msra.mxu0 %v359
    %455 = vmatprep.subr.mxu0 0.0
    %456 = vmatpush1.msra.mxu0 %v358
    %457 = vmatprep.subr.mxu0 0.0
    %458 = vmatpush1.msra.mxu0 %v357
    %459 = vmatprep.subr.mxu0 0.0
    %460 = vmatpush1.msra.mxu0 %v356
    %461 = vmatprep.subr.mxu0 0.0
    %462 = vmatpush1.msra.mxu0 %v355
    %463 = vmatprep.subr.mxu0 0.0
    %464 = vmatpush1.msra.mxu0 %v354
    %465 = vmatprep.subr.mxu0 0.0
    %466 = vmatpush1.msra.mxu0 %v353
    %467 = vmatprep.subr.mxu0 0.0
    %468 = vmatpush1.msra.mxu0 %v352
    %469 = vmatprep.subr.mxu0 0.0
    %470 = vmatpush1.msra.mxu0 %v351
    %471 = vmatprep.subr.mxu0 0.0
    %472 = vmatpush2.msra.mxu0 0.0
    %473 = vmatprep.subr.mxu0 0.0
    %474 = vmatpush2.msra.mxu0 0.0
    %475 = vmatprep.subr.mxu0 0.0
    %476 = vmatpush2.msra.mxu0 0.0
    %477 = vmatprep.subr.mxu0 0.0
    %478 = vmatpush2.msra.mxu0 0.0
    %479 = vmatprep.subr.mxu0 0.0
    %480 = vmatpush2.msra.mxu0 0.0
    %481 = vmatprep.subr.mxu0 0.0
    %482 = vmatpush2.msra.mxu0 0.0
    %483 = vmatprep.subr.mxu0 0.0
    %484 = vmatpush2.msra.mxu0 0.0
    %485 = vmatprep.subr.mxu0 0.0
    %486 = vmatpush2.msra.mxu0 0.0
    %487 = vmatprep.subr.mxu0 0.0
    %488 = vmatpush2.msra.mxu0 0.0
    %489 = vmatprep.subr.mxu0 0.0
    %490 = vmatpush2.msra.mxu0 0.0
    %491 = vmatprep.subr.mxu0 0.0
    %492 = vmatpush2.msra.mxu0 0.0
    %493 = vmatprep.subr.mxu0 0.0
    %494 = vmatpush2.msra.mxu0 0.0
    %495 = vmatprep.subr.mxu0 0.0
    %496 = vmatpush2.msra.mxu0 %v370
    %497 = vmatprep.subr.mxu0 0.0
    %498 = vmatpush2.msra.mxu0 %v369
    %499 = vmatprep.subr.mxu0 0.0
    %500 = vmatpush2.msra.mxu0 %v368
    %501 = vmatprep.subr.mxu0 0.0
    %502 = vmatpush2.msra.mxu0 %v367
    %503 = vmatprep.mubr.f32.mxu0 %v435
    %504 = vmatmul.mubr.f32.gmra.mxu0 %v433
    %v505 = vpop.f32.mrf.mxu0
    %v506 = vadd.f32 0.0, %v505
    %v507 = vpop.f32.mrf.mxu0
    %508 = vmatprep.mubr.f32.mxu0 %v437
    %509 = vmatmul.mubr.f32.gmra.mxu0 %v434
    %v510 = vpop.f32.mrf.mxu0
    %v511 = vadd.f32 0.0, %v510
    %v512 = vpop.f32.mrf.mxu0
    %513 = vdwg.mxu0
    %v514 = vsel %vm216, %v506, 0.0
    %v515 = vsel %vm216, %v511, 0.0
    %v516 = vadd.f32 %v514, %v515
    %v517 = vrot.slane %v516, 4
    %v518 = vadd.f32 %v516, %v517
    %v519 = vrot.slane %v518, 2
    %v520 = vadd.f32 %v518, %v519
    %v521 = vrot.slane %v520, 1
    %v522 = vadd.f32 %v520, %v521
    %v523 = vmul.f32 %v522, %v313
    %v524 = vsub.f32 %v506, %v523
    %v525 = vsub.f32 %v511, %v523
    %v526 = vmul.f32 %v524, %v524
    %v527 = vmul.f32 %v525, %v525
    %v528 = vsel %vm216, %v526, 0.0
    %v529 = vsel %vm216, %v527, 0.0
    %v530 = vadd.f32 %v528, %v529
    %v531 = vrot.slane %v530, 4
    %v532 = vadd.f32 %v530, %v531
    %v533 = vrot.slane %v532, 2
    %v534 = vadd.f32 %v532, %v533
    %v535 = vrot.slane %v534, 1
    %v536 = vadd.f32 %v534, %v535
    %v537 = vmul.f32 %v536, %v313
    %v539 = vlaneseq
    %v540 = vshrl.u32 %v539, 7
    %v541 = vsub.s32 0, %v540
    %v542 = vrot.slane %v371, %v541
    %v544 = vmul.f32 %v542, %v524
    %v545 = vmul.f32 %v542, %v525
    %v546 = vadd.f32 %v537, 1e-05
    %v547 = vrsqrt.pop %v546
    %v548 = vmul.f32 %v544, %v547
    %v549 = vmul.f32 %v545, %v547
    %v551 = vlaneseq
    %v552 = vshrl.u32 %v551, 7
    %v553 = vsub.s32 0, %v552
    %v554 = vrot.slane %v372, %v553
    %v556 = vadd.f32 %v548, %v554
    %v557 = vadd.f32 %v549, %v554
    %v558 = vmax.f32 %v556, 0.0
    %v559 = vmax.f32 %v557, 0.0
    %560 = vst.msk [vmem:[#allocation2] sm:$0xff] %vm216, %v558
    %561 = vst.msk [vmem:[#allocation2 + $0x8] sm:$0xff] %vm216, %v559
    // Predicated region
    $region34: #{tpu_custom_call.1} parent=1 // pred_check
      _
    $region35: #{tpu_custom_call.1} parent=1 // pred_check_branch
      %563 = sbr.rel (0) target = $region37
    $region36: #{tpu_custom_call.1} parent=1 // pred_region
      %s565 = ssub.s32 256, 256
      %566 = vsyncadd [#allocation3], %s565
      %s567 = sshll.u32 [#allocation2], 4
      %s568 = int_to_ptr.vmem [resolvable:$true] %s567
      %573 = dma.vmem_to_hbm [thread:$0]  %s568, 256, %s8, [#allocation3], 128, 128, 8
    $region37: #{tpu_custom_call.1} parent=1 // pred_fallthru
      _
    // Predicated region
    $region38: #{tpu_custom_call.1} parent=1 // pred_check
      _
    $region39: #{tpu_custom_call.1} parent=1 // pred_check_branch
      %575 = sbr.rel (0) target = $region41
    $region40: #{tpu_custom_call.1} parent=1 // pred_region
      %576 = dma.done [#allocation3], 256
    $region41: #{tpu_custom_call.1} parent=1 // pred_fallthru
      _
    %577 = vsyncpa [#allocation3], 1

</llo_original>
